<compile_context>
chip_gen: v6e
topology: v6e:2x2x1
jax: 0.10.0
libtpu: 0.0.40
codegen_flags: <defaults>
</compile_context>

<pallas_src>
import jax
import jax.numpy as jnp
from jax.experimental import pallas as pl
from jax.experimental.pallas import tpu as pltpu

_LANE = 128
_SUBLANE = 8


def _sigmoid_kernel(x_ref, o_ref):
    # sigmoid(x) = 0.5 * tanh(0.5 * x) + 0.5 (exact identity; tanh -> EUP).
    x = x_ref[...].astype(jnp.float32)
    o_ref[...] = (0.5 * jnp.tanh(0.5 * x) + 0.5).astype(o_ref.dtype)


def _tpu_generation_defaults():
    """Pick (target_block_bytes, vmem_limit_bytes) per TPU generation.

    v5e: 16 MiB default scoped VMEM -> 2 MiB blocks (4 buffers = 8 MiB).
    v6e: 32 MiB default scoped VMEM -> 4 MiB blocks (4 buffers = 16 MiB).
    v7x: 64 MiB physical / 32 MiB default scoped, 3.2 TB/s HBM -> 6 MiB
         blocks to amortize per-step overhead; raise scoped limit to 48 MiB.
    Unknown / non-TPU backends fall back to the conservative v5e setting.
    """
    target_block_bytes = 2 * 1024 * 1024
    vmem_limit_bytes = None
    kind = ""
    try:
        kind = jax.devices()[0].device_kind.lower()
    except Exception:  # pragma: no cover - defensive
        pass
    if "v7" in kind:
        target_block_bytes = 6 * 1024 * 1024
        vmem_limit_bytes = 48 << 20
    elif "v6" in kind:
        target_block_bytes = 4 * 1024 * 1024
    return target_block_bytes, vmem_limit_bytes


def _pick_tr(R, C, itemsize, sub, target_block_bytes,
             min_steps=8, min_step_bytes=1 << 20):
    """Row-block size: a multiple of `sub`, <= target_block_bytes per block,
    and (for big tensors) small enough that the 1-D grid has >= min_steps
    steps so both v7x TensorCores get work and DMA/compute overlap."""
    row_bytes = C * itemsize
    max_tr = max(sub, (target_block_bytes // row_bytes) // sub * sub)
    total_bytes = R * row_bytes
    if total_bytes >= min_steps * min_step_bytes:
        # Cap tr so the grid has at least ~min_steps blocks (>= ~4 per core
        # on v7x) while keeping each block >= ~1 MiB.
        desired_tr = max(sub, pl.cdiv(pl.cdiv(R, min_steps), sub) * sub)
        tr = min(max_tr, desired_tr)
    else:
        tr = max_tr
    if tr >= R:
        tr = R  # single full-extent block (always legal, any R)
    return tr


def _run_2d(x2, R, C, tr, n_elems, itemsize, dtype, vmem_limit_bytes=None):
    """pallas_call on a (R, C) view with a 1-D cdiv grid of (tr, C) blocks."""
    grid = (pl.cdiv(R, tr),)
    cp_kwargs = dict(dimension_semantics=("parallel",))
    if vmem_limit_bytes is not None:
        cp_kwargs["vmem_limit_bytes"] = int(vmem_limit_bytes)
    return pl.pallas_call(
        _sigmoid_kernel,
        out_shape=jax.ShapeDtypeStruct((R, C), dtype),
        grid_spec=pltpu.PrefetchScalarGridSpec(
            num_scalar_prefetch=0,
            grid=grid,
            in_specs=[pl.BlockSpec((tr, C), lambda i: (i, 0))],
            out_specs=pl.BlockSpec((tr, C), lambda i: (i, 0)),
        ),
        compiler_params=pltpu.CompilerParams(**cp_kwargs),
        cost_estimate=pl.CostEstimate(
            flops=4 * n_elems,
            transcendentals=n_elems,
            bytes_accessed=2 * n_elems * itemsize,
        ),
    )(x2)


def sigmoid_pallas(x, *, target_block_bytes=None, max_lanes=8192):
    """Elementwise sigmoid via Pallas. Accepts any rank / any element count."""
    orig_shape = x.shape
    dtype = x.dtype
    N = int(x.size)
    if N == 0:
        return x
    itemsize = jnp.dtype(dtype).itemsize
    # Minimum sublane multiple for the second-to-last block dim:
    # f32 -> 8, bf16 -> 16, int8/fp8 -> 32.
    sub = _SUBLANE * max(1, 4 // itemsize)

    gen_tbb, vmem_limit_bytes = _tpu_generation_defaults()
    if target_block_bytes is None:
        target_block_bytes = gen_tbb

    flat = x.reshape(-1)

    # ---------- Fast path: N % 128 == 0 -> lane-dense reshape, no pad/slice ----------
    if N % _LANE == 0:
        q = N // _LANE
        # Lane width C = 128*m, the largest divisor of q with C <= max_lanes.
        m_cap = max(1, min(q, max_lanes // _LANE))
        m = 1
        for cand in range(m_cap, 0, -1):
            if q % cand == 0:
                m = cand
                break
        C = _LANE * m
        R = N // C

        tr = _pick_tr(R, C, itemsize, sub, target_block_bytes)
        x2 = flat.reshape(R, C)
        out = _run_2d(x2, R, C, tr, N, itemsize, dtype,
                      vmem_limit_bytes=vmem_limit_bytes)
        return out.reshape(orig_shape)

    # ---------- Fallback: ragged sizes -> pad to one 512-wide row, cdiv grid ----------
    C = 4 * _LANE  # 512 lanes: dense vst, few DMA descriptors, <=511 elems padding
    Np = pl.cdiv(N, C) * C
    flat_p = jnp.pad(flat, (0, Np - N))
    R = Np // C
    tr = _pick_tr(R, C, itemsize, sub, target_block_bytes)
    x2 = flat_p.reshape(R, C)
    out = _run_2d(x2, R, C, tr, Np, itemsize, dtype,
                  vmem_limit_bytes=vmem_limit_bytes)
    return out.reshape(-1)[:N].reshape(orig_shape)


class SigmoidPallas:
    """Mirrors the PyTorch Sigmoid Module: caches forward output in train mode.

    NOTE: the cached activation (self.forward_sigm) is plain Python state,
    mirroring the reference module; do not rely on it under jax.jit / vmap.
    """

    def __init__(self):
        self.forward_sigm = None
        self.mode = "train"

    def __call__(self, x):
        return self.forward(x)

    def forward(self, x):
        sig = sigmoid_pallas(x)
        if self.mode == "train":
            self.forward_sigm = sig
        return sig

    def backward(self, gradwrtoutput):
        # grad = g * sig * (1 - sig); tiny elementwise glue in plain JAX.
        return gradwrtoutput * self.forward_sigm * (1.0 - self.forward_sigm)

    def get_params(self):
        return []

    def set_params(self, params):
        pass

    def params(self):
        return []

    def train(self):
        self.mode = "train"

    def eval(self):
        self.mode = "eval"


if __name__ == "__main__":
    key = jax.random.PRNGKey(0)
    x = jax.random.normal(key, (2, 4, 16, 16), dtype=jnp.float32)

    mod = SigmoidPallas()
    y = mod(x)
    y = jax.block_until_ready(y)

    # Reference check (tolerance 1e-5: tanh-based formulation differs from
    # lax.logistic by a few f32 ULPs).
    y_ref = jax.nn.sigmoid(x)
    assert y.shape == x.shape and y.dtype == x.dtype
    assert jnp.allclose(y, y_ref, atol=1e-5, rtol=1e-5)

    # 128-aligned shape whose row count is NOT a multiple of tr: exercises the
    # new cdiv grid with a masked partial last block (no pad, no slice).
    x1 = jax.random.normal(jax.random.PRNGKey(2), (1000, 128), dtype=jnp.float32)
    y1 = jax.block_until_ready(sigmoid_pallas(x1))
    assert y1.shape == x1.shape and y1.dtype == x1.dtype
    assert jnp.allclose(y1, jax.nn.sigmoid(x1), atol=1e-5, rtol=1e-5)

    # Ragged (non-128-multiple) fallback path.
    x2 = jax.random.normal(jax.random.PRNGKey(1), (3, 7, 5), dtype=jnp.float32)
    y2 = jax.block_until_ready(sigmoid_pallas(x2))
    assert y2.shape == x2.shape and y2.dtype == x2.dtype
    assert jnp.allclose(y2, jax.nn.sigmoid(x2), atol=1e-5, rtol=1e-5)

    # bf16 dtype check (sub-lane quantum 16, f32 upcast inside kernel).
    x3 = jax.random.normal(jax.random.PRNGKey(3), (64, 256), dtype=jnp.bfloat16)
    y3 = jax.block_until_ready(sigmoid_pallas(x3))
    assert y3.shape == x3.shape and y3.dtype == x3.dtype
    assert jnp.allclose(y3.astype(jnp.float32),
                        jax.nn.sigmoid(x3.astype(jnp.float32)),
                        atol=2e-2, rtol=2e-2)

    # Backward smoke test (pure JAX glue).
    g = jnp.ones_like(x)
    dx = jax.block_until_ready(mod.backward(g))
    assert dx.shape == x.shape

    print("KERNEL_OK")
</pallas_src>

<mosaic_0001>
module attributes {stable_mosaic.version = 11 : i64} {
  func.func @_sigmoid_kernel(%arg0: i32, %arg1: memref<1x2048xf32, #tpu.memory_space<vmem>>, %arg2: memref<1x2048xf32, #tpu.memory_space<vmem>>) attributes {dimension_semantics = [#tpu.dimension_semantics<parallel>], iteration_bounds = array<i64: 1>, scalar_prefetch = 0 : i64, scratch_operands = 0 : i64, tpu.core_type = #tpu.core_type<tc>, window_params = [{transform_indices = @transform_0, window_bounds = array<i64: 1, 2048>}, {transform_indices = @transform_1, window_bounds = array<i64: 1, 2048>}]} {
    %c0 = arith.constant 0 : index
    %c0_0 = arith.constant 0 : index
    %0 = vector.load %arg1[%c0, %c0_0] : memref<1x2048xf32, #tpu.memory_space<vmem>>, vector<1x2048xf32>
    %cst = arith.constant 5.000000e-01 : f32
    %1 = vector.broadcast %cst : f32 to vector<1x2048xf32>
    %2 = arith.mulf %1, %0 : vector<1x2048xf32>
    %3 = math.tanh %2 : vector<1x2048xf32>
    %cst_1 = arith.constant 5.000000e-01 : f32
    %4 = vector.broadcast %cst_1 : f32 to vector<1x2048xf32>
    %5 = arith.mulf %4, %3 : vector<1x2048xf32>
    %cst_2 = arith.constant 5.000000e-01 : f32
    %6 = vector.broadcast %cst_2 : f32 to vector<1x2048xf32>
    %7 = arith.addf %5, %6 : vector<1x2048xf32>
    %c0_3 = arith.constant 0 : index
    %c0_4 = arith.constant 0 : index
    %8 = vector.load %arg2[%c0_3, %c0_4] : memref<1x2048xf32, #tpu.memory_space<vmem>>, vector<1x2048xf32>
    tpu.vector_store %arg2[%c0_3, %c0_4], %7 {strides = array<i32>} : memref<1x2048xf32, #tpu.memory_space<vmem>>, vector<1x2048xf32>,
    return
  }
  func.func @transform_0(%arg0: i32) -> (i32, i32) {
    %c0_i32 = arith.constant 0 : i32
    %c0_i32_0 = arith.constant 0 : i32
    return %arg0, %c0_i32 : i32, i32
  }
  func.func @transform_1(%arg0: i32) -> (i32, i32) {
    %c0_i32 = arith.constant 0 : i32
    %c0_i32_0 = arith.constant 0 : i32
    return %arg0, %c0_i32 : i32, i32
  }
}

</mosaic_0001>

<llo_original>
// kernel: tpu_custom_call.1
$region0: #{tpu_custom_call.1}
  #allocation0 [shape = 'u32[]', space=smem, size = 0x4, offset = 0x4, fixed_abs, tag = 'smem constant byte address 0x4 - core index']
  #allocation1 [shape = 'u32[144,128]{1,0:T(1,128)}', space=vmem, size = 0x12000, scoped, tag = 'internal scratch']
  %s0 = inlined_call_operand.hbm [shape: f32[1,2048], index: 0, kind: input, shape index: {}]
  %s1 = inlined_call_operand.hbm [shape: f32[1,2048], index: 1, kind: output, shape index: {}]
  %s2 = sld [smem:[#allocation0]]
  $region18: #{tpu_custom_call.1} parent=0
    _
  %s4 = ssub.s32 1, %s2
  %s5 = scalar_select 0, %s4, %s2
  $region1: #{tpu_custom_call.1} parent=0
    #allocation2 [shape = 'u8[8192]{0}', space=vmem, size = 0x2000, scoped, tag = 'input window, operand 0, single buffered']
    #allocation3 [shape = 's32[1]{0}', space=sflag, size = 0x4, scoped, tag = 'scoped memory for tpu_custom_call.1']
    #allocation4 [shape = 's32[1]{0}', space=sflag, size = 0x4, scoped, tag = 'scoped memory for tpu_custom_call.1']
    #allocation5 [shape = 'u8[8192]{0}', space=vmem, size = 0x2000, scoped, tag = 'output window, operand 0, single buffered']
    %6 = vsyncpa [#allocation3], 0
    %7 = vsyncpa [#allocation4], 0
    // Predicated region
    $region2: #{tpu_custom_call.1} parent=1 // pred_check
      _
    $region3: #{tpu_custom_call.1} parent=1 // pred_check_branch
      %9 = sbr.rel (0) target = $region5
    $region4: #{tpu_custom_call.1} parent=1 // pred_region
      %s11 = ssub.s32 256, 256
      %12 = vsyncadd [#allocation3], %s11
      %s14 = sshll.u32 [#allocation2], 4
      %s15 = int_to_ptr.vmem [resolvable:$true] %s14
      %17 = dma.hbm_to_vmem [thread:$0]  %s0, 256, %s15, [#allocation3]
    $region5: #{tpu_custom_call.1} parent=1 // pred_fallthru
      _
    // Predicated region
    $region6: #{tpu_custom_call.1} parent=1 // pred_check
      _
    $region7: #{tpu_custom_call.1} parent=1 // pred_check_branch
      %19 = sbr.rel (0) target = $region9
    $region8: #{tpu_custom_call.1} parent=1 // pred_region
      %20 = dma.done [#allocation3], 256
    $region9: #{tpu_custom_call.1} parent=1 // pred_fallthru
      _
    %v21 = vld [vmem:[#allocation2] sm:$0xff]
    %v22 = vld [vmem:[#allocation2 + $0x8] sm:$0xff]
    %v23 = vmul.f32 %v21, 0.5
    %v24 = vmul.f32 %v22, 0.5
    %v25 = vtanh.pop %v23
    %v26 = vtanh.pop %v24
    %v27 = vmul.f32 %v25, 0.5
    %v28 = vmul.f32 %v26, 0.5
    %v29 = vadd.f32 %v27, 0.5
    %v30 = vadd.f32 %v28, 0.5
    %31 = vst [vmem:[#allocation5] sm:$0xff] %v29
    %32 = vst [vmem:[#allocation5 + $0x8] sm:$0xff] %v30
    // Predicated region
    $region10: #{tpu_custom_call.1} parent=1 // pred_check
      _
    $region11: #{tpu_custom_call.1} parent=1 // pred_check_branch
      %34 = sbr.rel (0) target = $region13
    $region12: #{tpu_custom_call.1} parent=1 // pred_region
      %s36 = ssub.s32 256, 256
      %37 = vsyncadd [#allocation4], %s36
      %s39 = sshll.u32 [#allocation5], 4
      %s40 = int_to_ptr.vmem [resolvable:$true] %s39
      %42 = dma.vmem_to_hbm [thread:$0]  %s40, 256, %s1, [#allocation4]
    $region13: #{tpu_custom_call.1} parent=1 // pred_fallthru
      _
    // Predicated region
    $region14: #{tpu_custom_call.1} parent=1 // pred_check
      _
    $region15: #{tpu_custom_call.1} parent=1 // pred_check_branch
      %44 = sbr.rel (0) target = $region17
    $region16: #{tpu_custom_call.1} parent=1 // pred_region
      %45 = dma.done [#allocation4], 256
    $region17: #{tpu_custom_call.1} parent=1 // pred_fallthru
      _
    %46 = vsyncpa [#allocation3], 1
    %47 = vsyncpa [#allocation4], 1

</llo_original>
